<compile_context>
chip_gen: v5e
topology: v5e:2x2
jax: 0.10.0
libtpu: 0.0.40
codegen_flags: <defaults>
</compile_context>

<pallas_src>
import jax
import jax.numpy as jnp
from jax.experimental import pallas as pl
from jax.experimental.pallas import tpu as pltpu

BN_EPS = 1e-5   # nn.BatchNorm1d default eps
N_CH = 4        # conv1 out_channels

# At scaled D/B on v6e/v7x set to jnp.bfloat16 (weights cast once in
# pack_params, elementwise BN/ReLU math stays f32 -- v5e has no bf16 VPU/EUP).
# Kept f32 here so the tiny-shape test matches the f32 reference to 1e-3.
MXU_DTYPE = jnp.float32

# Row indices inside the stacked [5, 4*2D] parameter-row operand.
_ROW_B1, _ROW_CW, _ROW_GAMMA, _ROW_BETA, _ROW_B2 = range(5)


def dqn1_kernel(x_ref, w1_ref, rows_ref, w2_ref, o_ref):
    # fc1, pre-tiled 4x along lanes: [B, D] @ [D, 4*2D] + b1_tiled -> [B, 4*2D]
    h = jnp.dot(x_ref[...], w1_ref[...],
                preferred_element_type=jnp.float32)
    h = h + rows_ref[_ROW_B1:_ROW_B1 + 1, :]

    B, L4 = h.shape
    inv_n = 1.0 / float(B * L4)

    # BatchNorm1d(4) training-mode stats, hoisted out of the channel dim.
    # Since the 4 channel blocks of h are identical copies of the fc1
    # activation, mean/var over the full [B, 4*2D] tensor equal mean/var of
    # the underlying [B, 2D] activation.  Single-pass: both full reductions
    # issue back-to-back (no reduce -> subtract -> reduce serialization).
    s1 = jnp.sum(h)
    s2 = jnp.sum(h * h)
    m = s1 * inv_n
    v = s2 * inv_n - m * m

    # Fold conv(1->4,k=1) + BN + gamma/beta into lane-dense per-channel rows:
    #   z = alpha_row * h + bias_row
    #   alpha = cw*gamma*rsqrt(cw^2*v + eps),  bias = beta - alpha*m
    # (the conv bias cancels exactly under the BN mean subtraction).
    cw_row = rows_ref[_ROW_CW:_ROW_CW + 1, :]
    g_row = rows_ref[_ROW_GAMMA:_ROW_GAMMA + 1, :]
    bt_row = rows_ref[_ROW_BETA:_ROW_BETA + 1, :]
    alpha_row = cw_row * g_row * jax.lax.rsqrt(cw_row * cw_row * v + BN_EPS)
    bias_row = bt_row - alpha_row * m

    z = jnp.maximum(h * alpha_row + bias_row, 0.0)        # ReLU, [B, 4*2D]

    # Single fused `out` matmul: K = 4*2D (=128 for D=16), lane-dense weight.
    b2_row = rows_ref[_ROW_B2:_ROW_B2 + 1, :o_ref.shape[1]]
    o_ref[...] = jnp.dot(z, w2_ref[...],
                         preferred_element_type=jnp.float32) + b2_row


def pack_params(w1, b1, cw, cb, gamma, beta, w2, b2):
    """One-time parameter repacking, kept OUT of the per-call path."""
    del cb  # conv bias cancels under training-mode BatchNorm mean subtraction
    D = w1.shape[1]
    L = 2 * D
    L4 = N_CH * L
    O = w2.shape[0]

    # fc1 weight/bias tiled 4x along lanes -> fc1 emits [B, 4*2D] directly.
    w1t4 = jnp.tile(jnp.transpose(w1), (1, N_CH)).astype(MXU_DTYPE)  # [D, 4*2D]
    b1_row = jnp.tile(b1.reshape(1, L), (1, N_CH))                   # [1, 4*2D]

    # Per-channel scalars pre-broadcast to lane-dense rows (index c*2D + l).
    cw_row = jnp.repeat(cw, L).reshape(1, L4)
    g_row = jnp.repeat(gamma, L).reshape(1, L4)
    bt_row = jnp.repeat(beta, L).reshape(1, L4)
    b2_row = jnp.zeros((1, L4), jnp.float32).at[0, :O].set(b2)

    rows = jnp.concatenate([b1_row, cw_row, g_row, bt_row, b2_row],
                           axis=0).astype(jnp.float32)               # [5, 4*2D]

    w2t = jnp.transpose(w2).astype(MXU_DTYPE)                        # [4*2D, O]
    return (w1t4, rows, w2t)


@jax.jit
def dqn1_forward(x, packed):
    """x: [B, D] f32, packed = pack_params(...). Returns [B, O] f32."""
    w1t4, rows, w2t = packed
    B = x.shape[0]
    O = w2t.shape[1]
    vmem = lambda: pl.BlockSpec(memory_space=pltpu.MemorySpace.VMEM)
    return pl.pallas_call(
        dqn1_kernel,
        out_shape=jax.ShapeDtypeStruct((B, O), jnp.float32),
        in_specs=[vmem(), vmem(), vmem(), vmem()],
        out_specs=vmem(),
    )(x, w1t4, rows, w2t)


def dqn1_reference(x, w1, b1, cw, cb, gamma, beta, w2, b2):
    """Pure-JAX reference of the (intended) PyTorch forward."""
    h = x @ w1.T + b1                                           # [B, 2D]
    y = cw[None, :, None] * h[:, None, :] + cb[None, :, None]   # [B, 4, 2D]
    mu = jnp.mean(y, axis=(0, 2), keepdims=True)
    var = jnp.mean((y - mu) ** 2, axis=(0, 2), keepdims=True)
    z = (y - mu) / jnp.sqrt(var + BN_EPS)
    z = z * gamma[None, :, None] + beta[None, :, None]
    z = jnp.maximum(z, 0.0)
    zf = z.reshape(x.shape[0], -1)                              # [B, 4*2D]
    return zf @ w2.T + b2


def init_params(key, input_size, output_size):
    D = input_size
    k1, k2, k3, k4, k5, k6 = jax.random.split(key, 6)
    # fc1: Linear(D, 2D), torch weight layout [out, in]
    lim1 = 1.0 / (D ** 0.5)
    w1 = jax.random.uniform(k1, (2 * D, D), jnp.float32, -lim1, lim1)
    b1 = jax.random.uniform(k2, (2 * D,), jnp.float32, -lim1, lim1)
    # conv1: Conv1d(1, 4, 1) -> weight [4,1,1] squeezed to [4], bias [4]
    cw = jax.random.uniform(k3, (N_CH,), jnp.float32, -1.0, 1.0)
    cb = jax.random.uniform(k4, (N_CH,), jnp.float32, -1.0, 1.0)
    # bn1: BatchNorm1d(4) default affine init
    gamma = jnp.ones((N_CH,), jnp.float32)
    beta = jnp.zeros((N_CH,), jnp.float32)
    # out: Linear(4*2D, O)
    fan2 = N_CH * 2 * D
    lim2 = 1.0 / (fan2 ** 0.5)
    w2 = jax.random.uniform(k5, (output_size, fan2), jnp.float32, -lim2, lim2)
    b2 = jax.random.uniform(k6, (output_size,), jnp.float32, -lim2, lim2)
    return w1, b1, cw, cb, gamma, beta, w2, b2


if __name__ == "__main__":
    # B=8: small, but f32-sublane-aligned and feeds >1 MXU row (perf review).
    B, INPUT_SIZE, OUTPUT_SIZE = 8, 16, 8
    key = jax.random.PRNGKey(0)
    kx, kp = jax.random.split(key)
    x = jax.random.normal(kx, (B, INPUT_SIZE), jnp.float32)
    params = init_params(kp, INPUT_SIZE, OUTPUT_SIZE)
    packed = pack_params(*params)      # one-time repack, not per forward

    out = dqn1_forward(x, packed)
    out = jax.block_until_ready(out)

    ref = dqn1_reference(x, *params)
    assert out.shape == (B, OUTPUT_SIZE), out.shape
    assert jnp.allclose(out, ref, rtol=1e-3, atol=1e-3), (out, ref)
    print("KERNEL_OK")
</pallas_src>

<mosaic_0001>
module attributes {stable_mosaic.version = 11 : i64} {
  func.func @dqn1_kernel(%arg0: memref<8x16xf32, #tpu.memory_space<vmem>>, %arg1: memref<16x128xf32, #tpu.memory_space<vmem>>, %arg2: memref<5x128xf32, #tpu.memory_space<vmem>>, %arg3: memref<128x8xf32, #tpu.memory_space<vmem>>, %arg4: memref<8x8xf32, #tpu.memory_space<vmem>>) attributes {dimension_semantics = [], scalar_prefetch = 0 : i64, scratch_operands = 0 : i64, tpu.core_type = #tpu.core_type<tc>} {
    %c0 = arith.constant 0 : index
    %c0_0 = arith.constant 0 : index
    %0 = vector.load %arg0[%c0, %c0_0] : memref<8x16xf32, #tpu.memory_space<vmem>>, vector<8x16xf32>
    %c0_1 = arith.constant 0 : index
    %c0_2 = arith.constant 0 : index
    %1 = vector.load %arg1[%c0_1, %c0_2] : memref<16x128xf32, #tpu.memory_space<vmem>>, vector<16x128xf32>
    %cst = arith.constant dense<0.000000e+00> : vector<8x128xf32>
    %2 = tpu.matmul %0, %1, %cst {dimension_numbers = #tpu.dot_dimension_numbers<[1], [0], [0], [1], [0, 0, 1, 1], [], []>} : vector<8x16xf32>, vector<16x128xf32>, vector<8x128xf32> -> vector<8x128xf32>
    %c0_3 = arith.constant 0 : index
    %c0_4 = arith.constant 0 : index
    %3 = vector.load %arg2[%c0_3, %c0_4] : memref<5x128xf32, #tpu.memory_space<vmem>>, vector<1x128xf32>
    %4 = vector.broadcast %3 : vector<1x128xf32> to vector<8x128xf32>
    %5 = arith.addf %2, %4 : vector<8x128xf32>
    %6 = vector.shape_cast %5 : vector<8x128xf32> to vector<1x8x128xf32>
    %cst_5 = arith.constant dense<0.000000e+00> : vector<1xf32>
    %7 = vector.multi_reduction <add>, %6, %cst_5 [1, 2] : vector<1x8x128xf32> to vector<1xf32>
    %8 = vector.shape_cast %7 : vector<1xf32> to vector<1x1x1xf32>
    %9 = vector.extract %8[0, 0, 0] : f32 from vector<1x1x1xf32>
    %10 = arith.mulf %5, %5 : vector<8x128xf32>
    %11 = vector.shape_cast %10 : vector<8x128xf32> to vector<1x8x128xf32>
    %cst_6 = arith.constant dense<0.000000e+00> : vector<1xf32>
    %12 = vector.multi_reduction <add>, %11, %cst_6 [1, 2] : vector<1x8x128xf32> to vector<1xf32>
    %13 = vector.shape_cast %12 : vector<1xf32> to vector<1x1x1xf32>
    %14 = vector.extract %13[0, 0, 0] : f32 from vector<1x1x1xf32>
    %cst_7 = arith.constant 9.765625E-4 : f32
    %15 = arith.mulf %9, %cst_7 : f32
    %cst_8 = arith.constant 9.765625E-4 : f32
    %16 = arith.mulf %14, %cst_8 : f32
    %17 = arith.mulf %15, %15 : f32
    %18 = arith.subf %16, %17 : f32
    %c1 = arith.constant 1 : index
    %c0_9 = arith.constant 0 : index
    %19 = vector.load %arg2[%c1, %c0_9] : memref<5x128xf32, #tpu.memory_space<vmem>>, vector<1x128xf32>
    %c2 = arith.constant 2 : index
    %c0_10 = arith.constant 0 : index
    %20 = vector.load %arg2[%c2, %c0_10] : memref<5x128xf32, #tpu.memory_space<vmem>>, vector<1x128xf32>
    %c3 = arith.constant 3 : index
    %c0_11 = arith.constant 0 : index
    %21 = vector.load %arg2[%c3, %c0_11] : memref<5x128xf32, #tpu.memory_space<vmem>>, vector<1x128xf32>
    %22 = arith.mulf %19, %20 : vector<1x128xf32>
    %23 = arith.mulf %19, %19 : vector<1x128xf32>
    %24 = vector.broadcast %18 : f32 to vector<1x128xf32>
    %25 = arith.mulf %23, %24 : vector<1x128xf32>
    %cst_12 = arith.constant 9.99999974E-6 : f32
    %26 = vector.broadcast %cst_12 : f32 to vector<1x128xf32>
    %27 = arith.addf %25, %26 : vector<1x128xf32>
    %28 = math.rsqrt %27 : vector<1x128xf32>
    %29 = arith.mulf %22, %28 : vector<1x128xf32>
    %30 = vector.broadcast %15 : f32 to vector<1x128xf32>
    %31 = arith.mulf %29, %30 : vector<1x128xf32>
    %32 = arith.subf %21, %31 : vector<1x128xf32>
    %33 = vector.broadcast %29 : vector<1x128xf32> to vector<8x128xf32>
    %34 = arith.mulf %5, %33 : vector<8x128xf32>
    %35 = vector.broadcast %32 : vector<1x128xf32> to vector<8x128xf32>
    %36 = arith.addf %34, %35 : vector<8x128xf32>
    %cst_13 = arith.constant 0.000000e+00 : f32
    %37 = vector.broadcast %cst_13 : f32 to vector<8x128xf32>
    %38 = arith.maximumf %36, %37 : vector<8x128xf32>
    %c4 = arith.constant 4 : index
    %c0_14 = arith.constant 0 : index
    %39 = vector.load %arg2[%c4, %c0_14] : memref<5x128xf32, #tpu.memory_space<vmem>>, vector<1x8xf32>
    %c0_15 = arith.constant 0 : index
    %c0_16 = arith.constant 0 : index
    %40 = vector.load %arg3[%c0_15, %c0_16] : memref<128x8xf32, #tpu.memory_space<vmem>>, vector<128x8xf32>
    %cst_17 = arith.constant dense<0.000000e+00> : vector<8x8xf32>
    %41 = tpu.matmul %38, %40, %cst_17 {dimension_numbers = #tpu.dot_dimension_numbers<[1], [0], [0], [1], [0, 0, 1, 1], [], []>} : vector<8x128xf32>, vector<128x8xf32>, vector<8x8xf32> -> vector<8x8xf32>
    %42 = vector.broadcast %39 : vector<1x8xf32> to vector<8x8xf32>
    %43 = arith.addf %41, %42 : vector<8x8xf32>
    %c0_18 = arith.constant 0 : index
    %c0_19 = arith.constant 0 : index
    %44 = vector.load %arg4[%c0_18, %c0_19] : memref<8x8xf32, #tpu.memory_space<vmem>>, vector<8x8xf32>
    tpu.vector_store %arg4[%c0_18, %c0_19], %43 {strides = array<i32>} : memref<8x8xf32, #tpu.memory_space<vmem>>, vector<8x8xf32>,
    return
  }
}

</mosaic_0001>

<llo_original>
// kernel: dqn1_forward.1
$region0: #{dqn1_forward.1}
  #allocation0 [shape = 'u32[]', space=smem, size = 0x4, offset = 0x4, fixed_abs, tag = 'smem constant byte address 0x4 - core index']
  #allocation1 [shape = 'u32[72,128]{1,0:T(1,128)}', space=vmem, size = 0x9000, scoped, tag = 'internal scratch']
  %s0 = inlined_call_operand.vmem [shape: f32[8,16], index: 0, kind: input, shape index: {}]
  %s1 = inlined_call_operand.vmem [shape: f32[16,128], index: 1, kind: input, shape index: {}]
  %s2 = inlined_call_operand.vmem [shape: f32[5,128], index: 2, kind: input, shape index: {}]
  %s3 = inlined_call_operand.vmem [shape: f32[128,8], index: 3, kind: input, shape index: {}]
  %s4 = inlined_call_operand.hbm [shape: f32[8,8], index: 4, kind: output, shape index: {}]
  %s5 = sld [smem:[#allocation0]]
  $region26: #{dqn1_forward.1} parent=0
    _
  %s7 = ssub.s32 1, %s5
  %s8 = scalar_select 0, %s7, %s5
  $region1: #{dqn1_forward.1} parent=0
    #allocation2 [shape = 'u8[4096]{0}', space=vmem, size = 0x1000, scoped, tag = 'output window, operand 0, single buffered']
    #allocation3 [shape = 's32[1]{0}', space=sflag, size = 0x4, scoped, tag = 'scoped memory for dqn1_forward.1']
    %9 = vsyncpa [#allocation3], 0
    // Predicated region
    $region2: #{dqn1_forward.1} parent=1 // pred_check
      _
    $region3: #{dqn1_forward.1} parent=1 // pred_check_branch
      %11 = sbr.rel (0) target = $region5
    $region4: #{dqn1_forward.1} parent=1 // pred_region
      _
    $region5: #{dqn1_forward.1} parent=1 // pred_fallthru
      _
    // Predicated region
    $region6: #{dqn1_forward.1} parent=1 // pred_check
      _
    $region7: #{dqn1_forward.1} parent=1 // pred_check_branch
      %13 = sbr.rel (0) target = $region9
    $region8: #{dqn1_forward.1} parent=1 // pred_region
      _
    $region9: #{dqn1_forward.1} parent=1 // pred_fallthru
      _
    // Predicated region
    $region10: #{dqn1_forward.1} parent=1 // pred_check
      _
    $region11: #{dqn1_forward.1} parent=1 // pred_check_branch
      %15 = sbr.rel (0) target = $region13
    $region12: #{dqn1_forward.1} parent=1 // pred_region
      _
    $region13: #{dqn1_forward.1} parent=1 // pred_fallthru
      _
    // Predicated region
    $region14: #{dqn1_forward.1} parent=1 // pred_check
      _
    $region15: #{dqn1_forward.1} parent=1 // pred_check_branch
      %17 = sbr.rel (0) target = $region17
    $region16: #{dqn1_forward.1} parent=1 // pred_region
      _
    $region17: #{dqn1_forward.1} parent=1 // pred_fallthru
      _
    %v18 = vld [vmem:[%s0] sm:$0xff]
    %v19 = vld [vmem:[%s1] sm:$0xff]
    %v20 = vld [vmem:[%s1 + $0x8] sm:$0xff]
    %v21 = vld [vmem:[%s2] sm:$0x1]
    %v22 = vperm.slane %v21, 0
    %vm23 = vcmask 130048
    %v25 = vsel %vm23, %v18, 0
    %27 = vmatpush.msra.mxu0 0.0
    %28 = vmatpush.msra.mxu0 0.0
    %29 = vmatpush.msra.mxu0 0.0
    %30 = vmatpush.msra.mxu0 0.0
    %31 = vmatpush.msra.mxu0 0.0
    %32 = vmatpush.msra.mxu0 0.0
    %33 = vmatpush.msra.mxu0 0.0
    %34 = vmatpush.msra.mxu0 0.0
    %35 = vmatpush.msra.mxu0 0.0
    %36 = vmatpush.msra.mxu0 0.0
    %37 = vmatpush.msra.mxu0 0.0
    %38 = vmatpush.msra.mxu0 0.0
    %39 = vmatpush.msra.mxu0 0.0
    %40 = vmatpush.msra.mxu0 0.0
    %41 = vmatpush.msra.mxu0 %v20
    %42 = vmatpush.msra.mxu0 %v19
    %43 = vmatmul.f32.gmra.mxu0 %v25
    %v44 = vpop.f32.mrf.mxu0
    %v45 = vadd.f32 %v22, %v44
    %46 = vdwg.mxu0
    %47 = vadd.xlane.f32.xlu0 %v45
    %v48 = vpop.xlane.xlu0 %47
    %v49 = vrot.slane %v48, 4
    %v50 = vadd.f32 %v48, %v49
    %v51 = vrot.slane %v50, 2
    %v52 = vadd.f32 %v50, %v51
    %v53 = vrot.slane %v52, 1
    %v54 = vadd.f32 %v52, %v53
    %s55 = vtos %v54
    %v56 = vmul.f32 %v45, %v45
    %57 = vadd.xlane.f32.xlu0 %v56
    %v58 = vpop.xlane.xlu0 %57
    %v59 = vrot.slane %v58, 4
    %v60 = vadd.f32 %v58, %v59
    %v61 = vrot.slane %v60, 2
    %v62 = vadd.f32 %v60, %v61
    %v63 = vrot.slane %v62, 1
    %v64 = vadd.f32 %v62, %v63
    %s65 = vtos %v64
    %s66 = smul.f32 %s55, 0.0009765625
    %s67 = smul.f32 %s65, 0.0009765625
    %s68 = smul.f32 %s66, %s66
    %s69 = ssub.f32 %s67, %s68
    %v70 = vld [vmem:[%s2 + $0x1] sm:$0x1]
    %v71 = vld [vmem:[%s2 + $0x2] sm:$0x1]
    %v72 = vld [vmem:[%s2 + $0x3] sm:$0x1]
    %v73 = vmul.f32 %v70, %v71
    %v74 = vmul.f32 %v70, %v70
    %v75 = vstv %s69
    %v76 = vmul.f32 %v74, %v75
    %v77 = vadd.f32 %v76, 1e-05
    %v78 = vrsqrt.pop %v77
    %v79 = vmul.f32 %v78, %v77
    %v80 = vmul.f32 %v79, %v78
    %v81 = vmul.f32 0.5, %v80
    %v82 = vsub.f32 1.5, %v81
    %v83 = vmul.f32 %v78, %v82
    %vm84 = vweird.f32 %v77
    %vm85 = vweird.f32 %v78
    %vm86 = vmor %vm84, %vm85
    %v87 = vsel %vm86, %v78, %v83
    %v88 = vmul.f32 %v73, %v87
    %v89 = vstv %s66
    %v90 = vmul.f32 %v88, %v89
    %v91 = vsub.f32 %v72, %v90
    %v92 = vperm.slane %v88, 0
    %v93 = vmul.f32 %v45, %v92
    %v94 = vperm.slane %v91, 0
    %v95 = vadd.f32 %v93, %v94
    %v96 = vmax.f32 %v95, 0.0
    %v97 = vld [vmem:[%s2 + $0x4] sm:$0x1]
    %v98 = vld [vmem:[%s3] sm:$0xff]
    %v99 = vld [vmem:[%s3 + $0x8] sm:$0xff]
    %v100 = vld [vmem:[%s3 + $0x10] sm:$0xff]
    %v101 = vld [vmem:[%s3 + $0x18] sm:$0xff]
    %v102 = vld [vmem:[%s3 + $0x20] sm:$0xff]
    %v103 = vld [vmem:[%s3 + $0x28] sm:$0xff]
    %v104 = vld [vmem:[%s3 + $0x30] sm:$0xff]
    %v105 = vld [vmem:[%s3 + $0x38] sm:$0xff]
    %v106 = vld [vmem:[%s3 + $0x40] sm:$0xff]
    %v107 = vld [vmem:[%s3 + $0x48] sm:$0xff]
    %v108 = vld [vmem:[%s3 + $0x50] sm:$0xff]
    %v109 = vld [vmem:[%s3 + $0x58] sm:$0xff]
    %v110 = vld [vmem:[%s3 + $0x60] sm:$0xff]
    %v111 = vld [vmem:[%s3 + $0x68] sm:$0xff]
    %v112 = vld [vmem:[%s3 + $0x70] sm:$0xff]
    %v113 = vld [vmem:[%s3 + $0x78] sm:$0xff]
    %v114 = vperm.slane %v97, 0
    %115 = vmatpush.msra.mxu0 %v113
    %116 = vmatpush.msra.mxu0 %v112
    %117 = vmatpush.msra.mxu0 %v111
    %118 = vmatpush.msra.mxu0 %v110
    %119 = vmatpush.msra.mxu0 %v109
    %120 = vmatpush.msra.mxu0 %v108
    %121 = vmatpush.msra.mxu0 %v107
    %122 = vmatpush.msra.mxu0 %v106
    %123 = vmatpush.msra.mxu0 %v105
    %124 = vmatpush.msra.mxu0 %v104
    %125 = vmatpush.msra.mxu0 %v103
    %126 = vmatpush.msra.mxu0 %v102
    %127 = vmatpush.msra.mxu0 %v101
    %128 = vmatpush.msra.mxu0 %v100
    %129 = vmatpush.msra.mxu0 %v99
    %130 = vmatpush.msra.mxu0 %v98
    %131 = vmatmul.f32.gmra.mxu0 %v96
    %v132 = vpop.f32.mrf.mxu0
    %v133 = vadd.f32 %v114, %v132
    %134 = vdwg.mxu0
    %vm135 = vcmask 64512
    %136 = vst.msk [vmem:[#allocation2] sm:$0xff] %vm135, %v133
    // Predicated region
    $region18: #{dqn1_forward.1} parent=1 // pred_check
      _
    $region19: #{dqn1_forward.1} parent=1 // pred_check_branch
      %138 = sbr.rel (0) target = $region21
    $region20: #{dqn1_forward.1} parent=1 // pred_region
      %140 = vsyncadd [#allocation3], 0
      %s142 = sshll.u32 [#allocation2], 4
      %s143 = int_to_ptr.vmem [resolvable:$true] %s142
      %s144 = sshll.u32 %s4, 4
      %s145 = int_to_ptr.hbm [resolvable:$true] %s144
      %147 = dma.vmem_to_hbm [thread:$0]  %s143, 128, %s145, [#allocation3]
    $region21: #{dqn1_forward.1} parent=1 // pred_fallthru
      _
    // Predicated region
    $region22: #{dqn1_forward.1} parent=1 // pred_check
      _
    $region23: #{dqn1_forward.1} parent=1 // pred_check_branch
      %149 = sbr.rel (0) target = $region25
    $region24: #{dqn1_forward.1} parent=1 // pred_region
      %151 = dma.done [#allocation3], 128
    $region25: #{dqn1_forward.1} parent=1 // pred_fallthru
      _
    %152 = vsyncpa [#allocation3], 1

</llo_original>
